<compile_context>
chip_gen: v7x
topology: tpu7x:2x2x1
jax: 0.10.0
libtpu: 0.0.40
codegen_flags: <defaults>
</compile_context>

<pallas_src>
import functools
import math

import numpy as np
import jax
import jax.numpy as jnp
from jax import lax
from jax.experimental import pallas as pl
from jax.experimental.pallas import tpu as pltpu

# Irwin-Hall(4) normalization: each byte ~ U{0..255}: mean 127.5, var 65535/12.
_IH_MEAN = 510.0
_IH_INV_STD = 1.0 / math.sqrt(4.0 * 65535.0 / 12.0)


def _noise_inject_kernel(seed_ref, mask_ref, lin_ref, x_ref, o_ref, *,
                         mul_scale, add_scale, tile_elems):
    """One grid step = one (batch, tile).  x_ref/o_ref/lin_ref: (tile_rows, cols)."""
    b = pl.program_id(0)
    t = pl.program_id(1)

    @pl.when(mask_ref[b] != 0)
    def _():
        x = x_ref[...].astype(jnp.float32)

        # ---- counter-based hash PRNG (lowbias32), unique per (b, tile, elem) ----
        # int32 overflow wraparound below is intentional: it equals u32 modular
        # arithmetic bitwise (two's complement) -- do not "fix" with wider types.
        base = seed_ref[b] * jnp.int32(-1640531527) + t * jnp.int32(tile_elems)
        h = (lin_ref[...] + base).astype(jnp.uint32)
        h = h ^ (h >> 16)
        h = h * jnp.uint32(0x7FEB352D)
        h = h ^ (h >> 15)
        h = h * jnp.uint32(0x846CA68B)
        h = h ^ (h >> 16)

        # Additive Gaussian ~ N(0,1): Irwin-Hall sum of the 4 bytes of h.
        # Integer adds + one int->float convert; truncated at ~+/-3.45 sigma.
        s = ((h & jnp.uint32(0xFF)) + ((h >> 8) & jnp.uint32(0xFF))
             + ((h >> 16) & jnp.uint32(0xFF)) + (h >> 24))
        s_f = s.astype(jnp.int32).astype(jnp.float32)
        add_c = add_scale * _IH_INV_STD                 # folded at trace time
        add_term = s_f * add_c + (-_IH_MEAN * add_c)    # == add_scale * N(0,1)

        # Multiplicative uniform: second word derived from h via a golden-ratio
        # multiply (decorrelated from the byte sum), high 23 bits -> f in [1,2)
        # via the mantissa trick.  factor = 1 + mul_scale*(2U-1), U = f-1.
        h2 = h * jnp.uint32(0x9E3779B9)
        f = lax.bitcast_convert_type((h2 >> 9) | jnp.uint32(0x3F800000),
                                     jnp.float32)
        factor = f * (2.0 * mul_scale) + (1.0 - 3.0 * mul_scale)

        o_ref[...] = (x * factor + add_term).astype(o_ref.dtype)

    @pl.when(mask_ref[b] == 0)
    def _():
        # mask==0 batch: all noise terms are multiplied by 0 -> pure pass-through.
        o_ref[...] = x_ref[...]


def _choose_layout(d_total):
    """Return (rows, cols, pad_elems): cols a multiple of 128 and rows a multiple
    of 8 (lane-dense, fully filled (8,128) vregs, unmasked vector stores).
    Pads instead of falling back to a 1-sublane / masked-store layout."""
    for cols in (2048, 1024, 512, 256, 128):
        if d_total % cols == 0 and (d_total // cols) % 8 == 0:
            return d_total // cols, cols, 0
    for cols in (2048, 1024, 512, 256, 128):
        if d_total % cols == 0:
            rows = d_total // cols
            rows_p = ((rows + 7) // 8) * 8
            return rows_p, cols, (rows_p - rows) * cols
    cols = 128
    rows = (d_total + cols - 1) // cols
    rows_p = ((rows + 7) // 8) * 8
    return rows_p, cols, rows_p * cols - d_total


def _choose_tile_rows(rows, cols, itemsize, max_bytes=4 << 20):
    """Largest power-of-2 split of rows keeping each block <= ~4 MiB and a
    multiple of 8 sublanes.  Resident VMEM <= 6 blocks (x/out/lin, double
    buffered) = 24 MiB, under the explicit 32 MiB scoped-VMEM limit and safe
    on v7x's 64 MiB physical VMEM."""
    tile_rows = rows
    while (tile_rows * cols * itemsize > max_bytes and tile_rows % 2 == 0
           and (tile_rows // 2) % 8 == 0):
        tile_rows //= 2
    return tile_rows


def noise_inject(x, seeds, ones_prob_mask, mul_scale, add_scale, training=True):
    """x: (B, C, H, W) float32. seeds: (B,) int32. ones_prob_mask: (B,) int32 (0/1)."""
    if not training:
        return x
    orig_shape = x.shape
    B = orig_shape[0]
    d_total = int(np.prod(orig_shape[1:]))
    rows, cols, pad = _choose_layout(d_total)
    itemsize = x.dtype.itemsize
    tile_rows = _choose_tile_rows(rows, cols, itemsize)
    n_tiles = rows // tile_rows
    tile_elems = tile_rows * cols

    x_flat = x.reshape(B, d_total)
    if pad:
        x_flat = jnp.pad(x_flat, ((0, 0), (0, pad)))
    x3 = x_flat.reshape(B, rows, cols)

    # Per-tile linear element indices, hoisted out of the kernel: constant (0,0)
    # block index in the BlockSpec -> fetched once, never re-materialized.
    lin = jnp.arange(tile_elems, dtype=jnp.int32).reshape(tile_rows, cols)

    kernel = functools.partial(
        _noise_inject_kernel,
        mul_scale=float(mul_scale),
        add_scale=float(add_scale),
        tile_elems=tile_elems,
    )

    n_elem = B * rows * cols
    cost = pl.CostEstimate(
        flops=35 * n_elem,
        transcendentals=0,
        bytes_accessed=2 * n_elem * itemsize + tile_elems * 4,
    )

    out = pl.pallas_call(
        kernel,
        out_shape=jax.ShapeDtypeStruct((B, rows, cols), x.dtype),
        grid_spec=pltpu.PrefetchScalarGridSpec(
            num_scalar_prefetch=2,  # seeds, ones_prob_mask -> SMEM
            grid=(B, n_tiles),
            in_specs=[
                pl.BlockSpec((tile_rows, cols),
                             lambda b, t, seed, msk: (0, 0)),
                pl.BlockSpec((None, tile_rows, cols),
                             lambda b, t, seed, msk: (b, t, 0)),
            ],
            out_specs=pl.BlockSpec((None, tile_rows, cols),
                                   lambda b, t, seed, msk: (b, t, 0)),
        ),
        compiler_params=pltpu.CompilerParams(
            dimension_semantics=("parallel", "parallel"),
            vmem_limit_bytes=32 << 20,
        ),
        cost_estimate=cost,
    )(seeds, ones_prob_mask, lin, x3)

    out_flat = out.reshape(B, rows * cols)
    if pad:
        out_flat = out_flat[:, :d_total]
    return out_flat.reshape(orig_shape)


if __name__ == "__main__":
    # module config (defaults of NoiseInject.__init__)
    drop_prob, add_prob, batch_prob = 0.2, 0.4, 0.8

    B, C, H, W = 2, 4, 16, 16
    key = jax.random.PRNGKey(0)
    kx, kb = jax.random.split(key, 2)
    x = jax.random.normal(kx, (B, C, H, W), dtype=jnp.float32)

    # host-side scalar draws, matching the torch code's np.random.beta(2, 5) calls
    rng = np.random.default_rng(0)
    beta_mul = float(rng.beta(2, 5))
    beta_add = float(rng.beta(2, 5))

    # per-batch ones_prob mask: (uniform(B,1,1) < batch_prob) -> 0/1 ints
    ones_prob = (jax.random.uniform(kb, (B,)) < batch_prob).astype(jnp.int32)
    seeds = jnp.arange(B, dtype=jnp.int32) + jnp.int32(1234)

    y = noise_inject(
        x, seeds, ones_prob,
        mul_scale=drop_prob * beta_mul,
        add_scale=add_prob * beta_add,
        training=True,
    )
    y = jax.block_until_ready(y)

    assert y.shape == x.shape and y.dtype == x.dtype
    assert bool(jnp.all(jnp.isfinite(y)))

    # batches with mask==0 must pass through unchanged; noisy batches must change
    x_np, y_np, m_np = np.asarray(x), np.asarray(y), np.asarray(ones_prob)
    for i in range(B):
        if m_np[i] == 0:
            assert np.array_equal(x_np[i], y_np[i])
        else:
            assert not np.array_equal(x_np[i], y_np[i])

    print("KERNEL_OK")
</pallas_src>

<mosaic_0001>
module attributes {stable_mosaic.version = 11 : i64} {
  func.func @_noise_inject_kernel(%arg0: i32, %arg1: i32, %arg2: memref<2xi32, #tpu.memory_space<smem>>, %arg3: memref<2xi32, #tpu.memory_space<smem>>, %arg4: memref<8x128xi32, #tpu.memory_space<vmem>>, %arg5: memref<1x8x128xf32, #tpu.memory_space<vmem>>, %arg6: memref<1x8x128xf32, #tpu.memory_space<vmem>>) attributes {dimension_semantics = [#tpu.dimension_semantics<parallel>, #tpu.dimension_semantics<parallel>], iteration_bounds = array<i64: 2, 1>, scalar_prefetch = 2 : i64, scratch_operands = 0 : i64, tpu.core_type = #tpu.core_type<tc>, window_params = [{pipeline_mode = #tpu.pipeline_mode<synchronous>, transform_indices = @transform_0, window_bounds = array<i64: 8, 128>}, {transform_indices = @transform_1, window_bounds = array<i64: 1, 8, 128>}, {transform_indices = @transform_2, window_bounds = array<i64: 1, 8, 128>}]} {
    %0 = arith.index_cast %arg0 : i32 to index
    %1 = memref.load %arg3[%0] : memref<2xi32, #tpu.memory_space<smem>>
    %c0_i32 = arith.constant 0 : i32
    %2 = arith.cmpi ne, %1, %c0_i32 : i32
    %3 = arith.extui %2 : i1 to i32
    %c0_i32_0 = arith.constant 0 : i32
    %4 = arith.cmpi ne, %3, %c0_i32_0 : i32
    scf.if %4 {
      %c0 = arith.constant 0 : index
      %c0_3 = arith.constant 0 : index
      %c0_4 = arith.constant 0 : index
      %10 = vector.load %arg5[%c0, %c0_3, %c0_4] : memref<1x8x128xf32, #tpu.memory_space<vmem>>, vector<1x8x128xf32>
      %11 = vector.shape_cast %10 : vector<1x8x128xf32> to vector<8x128xf32>
      %12 = arith.index_cast %arg0 : i32 to index
      %13 = memref.load %arg2[%12] : memref<2xi32, #tpu.memory_space<smem>>
      %c-1640531527_i32 = arith.constant -1640531527 : i32
      %14 = arith.muli %13, %c-1640531527_i32 : i32
      %c1024_i32 = arith.constant 1024 : i32
      %15 = arith.muli %arg1, %c1024_i32 : i32
      %16 = arith.addi %14, %15 : i32
      %c0_5 = arith.constant 0 : index
      %c0_6 = arith.constant 0 : index
      %17 = vector.load %arg4[%c0_5, %c0_6] : memref<8x128xi32, #tpu.memory_space<vmem>>, vector<8x128xi32>
      %18 = vector.broadcast %16 : i32 to vector<8x128xi32>
      %19 = arith.addi %17, %18 : vector<8x128xi32>
      %c16_i32 = arith.constant 16 : i32
      %20 = vector.broadcast %c16_i32 : i32 to vector<8x128xi32>
      %21 = arith.shrui %19, %20 : vector<8x128xi32>
      %22 = arith.xori %19, %21 : vector<8x128xi32>
      %c2146121005_i32 = arith.constant 2146121005 : i32
      %23 = vector.broadcast %c2146121005_i32 : i32 to vector<8x128xi32>
      %24 = arith.muli %22, %23 : vector<8x128xi32>
      %c15_i32 = arith.constant 15 : i32
      %25 = vector.broadcast %c15_i32 : i32 to vector<8x128xi32>
      %26 = arith.shrui %24, %25 : vector<8x128xi32>
      %27 = arith.xori %24, %26 : vector<8x128xi32>
      %c-2073254261_i32 = arith.constant -2073254261 : i32
      %28 = vector.broadcast %c-2073254261_i32 : i32 to vector<8x128xi32>
      %29 = arith.muli %27, %28 : vector<8x128xi32>
      %c16_i32_7 = arith.constant 16 : i32
      %30 = vector.broadcast %c16_i32_7 : i32 to vector<8x128xi32>
      %31 = arith.shrui %29, %30 : vector<8x128xi32>
      %32 = arith.xori %29, %31 : vector<8x128xi32>
      %c255_i32 = arith.constant 255 : i32
      %33 = vector.broadcast %c255_i32 : i32 to vector<8x128xi32>
      %34 = arith.andi %32, %33 : vector<8x128xi32>
      %c8_i32 = arith.constant 8 : i32
      %35 = vector.broadcast %c8_i32 : i32 to vector<8x128xi32>
      %36 = arith.shrui %32, %35 : vector<8x128xi32>
      %c255_i32_8 = arith.constant 255 : i32
      %37 = vector.broadcast %c255_i32_8 : i32 to vector<8x128xi32>
      %38 = arith.andi %36, %37 : vector<8x128xi32>
      %39 = arith.addi %34, %38 : vector<8x128xi32>
      %c16_i32_9 = arith.constant 16 : i32
      %40 = vector.broadcast %c16_i32_9 : i32 to vector<8x128xi32>
      %41 = arith.shrui %32, %40 : vector<8x128xi32>
      %c255_i32_10 = arith.constant 255 : i32
      %42 = vector.broadcast %c255_i32_10 : i32 to vector<8x128xi32>
      %43 = arith.andi %41, %42 : vector<8x128xi32>
      %44 = arith.addi %39, %43 : vector<8x128xi32>
      %c24_i32 = arith.constant 24 : i32
      %45 = vector.broadcast %c24_i32 : i32 to vector<8x128xi32>
      %46 = arith.shrui %32, %45 : vector<8x128xi32>
      %47 = arith.addi %44, %46 : vector<8x128xi32>
      %48 = arith.sitofp %47 : vector<8x128xi32> to vector<8x128xf32>
      %cst = arith.constant 3.15237441E-4 : f32
      %49 = vector.broadcast %cst : f32 to vector<8x128xf32>
      %50 = arith.mulf %48, %49 : vector<8x128xf32>
      %cst_11 = arith.constant -0.160771087 : f32
      %51 = vector.broadcast %cst_11 : f32 to vector<8x128xf32>
      %52 = arith.addf %50, %51 : vector<8x128xf32>
      %c-1640531527_i32_12 = arith.constant -1640531527 : i32
      %53 = vector.broadcast %c-1640531527_i32_12 : i32 to vector<8x128xi32>
      %54 = arith.muli %32, %53 : vector<8x128xi32>
      %c9_i32 = arith.constant 9 : i32
      %55 = vector.broadcast %c9_i32 : i32 to vector<8x128xi32>
      %56 = arith.shrui %54, %55 : vector<8x128xi32>
      %c1065353216_i32 = arith.constant 1065353216 : i32
      %57 = vector.broadcast %c1065353216_i32 : i32 to vector<8x128xi32>
      %58 = arith.ori %56, %57 : vector<8x128xi32>
      %59 = tpu.bitcast %58 : vector<8x128xi32> -> vector<8x128xf32>
      %cst_13 = arith.constant 0.0914222151 : f32
      %60 = vector.broadcast %cst_13 : f32 to vector<8x128xf32>
      %61 = arith.mulf %59, %60 : vector<8x128xf32>
      %cst_14 = arith.constant 0.862866699 : f32
      %62 = vector.broadcast %cst_14 : f32 to vector<8x128xf32>
      %63 = arith.addf %61, %62 : vector<8x128xf32>
      %64 = arith.mulf %11, %63 : vector<8x128xf32>
      %65 = arith.addf %64, %52 : vector<8x128xf32>
      %c0_15 = arith.constant 0 : index
      %c0_16 = arith.constant 0 : index
      %c0_17 = arith.constant 0 : index
      %66 = vector.load %arg6[%c0_15, %c0_16, %c0_17] : memref<1x8x128xf32, #tpu.memory_space<vmem>>, vector<1x8x128xf32>
      %67 = vector.shape_cast %66 : vector<1x8x128xf32> to vector<8x128xf32>
      %68 = vector.shape_cast %65 : vector<8x128xf32> to vector<1x8x128xf32>
      tpu.vector_store %arg6[%c0_15, %c0_16, %c0_17], %68 {strides = array<i32>} : memref<1x8x128xf32, #tpu.memory_space<vmem>>, vector<1x8x128xf32>,
    } else {
    }
    %5 = arith.index_cast %arg0 : i32 to index
    %6 = memref.load %arg3[%5] : memref<2xi32, #tpu.memory_space<smem>>
    %c0_i32_1 = arith.constant 0 : i32
    %7 = arith.cmpi eq, %6, %c0_i32_1 : i32
    %8 = arith.extui %7 : i1 to i32
    %c0_i32_2 = arith.constant 0 : i32
    %9 = arith.cmpi ne, %8, %c0_i32_2 : i32
    scf.if %9 {
      %c0 = arith.constant 0 : index
      %c0_3 = arith.constant 0 : index
      %c0_4 = arith.constant 0 : index
      %10 = vector.load %arg5[%c0, %c0_3, %c0_4] : memref<1x8x128xf32, #tpu.memory_space<vmem>>, vector<1x8x128xf32>
      %11 = vector.shape_cast %10 : vector<1x8x128xf32> to vector<8x128xf32>
      %c0_5 = arith.constant 0 : index
      %c0_6 = arith.constant 0 : index
      %c0_7 = arith.constant 0 : index
      %12 = vector.load %arg6[%c0_5, %c0_6, %c0_7] : memref<1x8x128xf32, #tpu.memory_space<vmem>>, vector<1x8x128xf32>
      %13 = vector.shape_cast %12 : vector<1x8x128xf32> to vector<8x128xf32>
      %14 = vector.shape_cast %11 : vector<8x128xf32> to vector<1x8x128xf32>
      tpu.vector_store %arg6[%c0_5, %c0_6, %c0_7], %14 {strides = array<i32>} : memref<1x8x128xf32, #tpu.memory_space<vmem>>, vector<1x8x128xf32>,
    } else {
    }
    return
  }
  func.func @transform_0(%arg0: i32, %arg1: i32, %arg2: memref<2xi32, #tpu.memory_space<smem>>, %arg3: memref<2xi32, #tpu.memory_space<smem>>) -> (i32, i32) {
    %c0_i32 = arith.constant 0 : i32
    %c0_i32_0 = arith.constant 0 : i32
    %c0_i32_1 = arith.constant 0 : i32
    return %c0_i32, %c0_i32_0 : i32, i32
  }
  func.func @transform_1(%arg0: i32, %arg1: i32, %arg2: memref<2xi32, #tpu.memory_space<smem>>, %arg3: memref<2xi32, #tpu.memory_space<smem>>) -> (i32, i32, i32) {
    %c0_i32 = arith.constant 0 : i32
    %c0_i32_0 = arith.constant 0 : i32
    return %arg0, %arg1, %c0_i32 : i32, i32, i32
  }
  func.func @transform_2(%arg0: i32, %arg1: i32, %arg2: memref<2xi32, #tpu.memory_space<smem>>, %arg3: memref<2xi32, #tpu.memory_space<smem>>) -> (i32, i32, i32) {
    %c0_i32 = arith.constant 0 : i32
    %c0_i32_0 = arith.constant 0 : i32
    return %arg0, %arg1, %c0_i32 : i32, i32, i32
  }
}

</mosaic_0001>

<llo_original>
// kernel: tpu_custom_call.1
$region0: #{tpu_custom_call.1}
  #allocation0 [shape = 'u32[]', space=smem, size = 0x4, offset = 0x4, fixed_abs, tag = 'smem constant byte address 0x4 - core index']
  #allocation1 [shape = 'u32[144,128]{1,0:T(1,128)}', space=vmem, size = 0x12000, scoped, tag = 'internal scratch']
  #allocation2 [shape = 's32[1]{0}', space=sflag, size = 0x4, scoped, tag = 'scoped memory for tpu_custom_call.1']
  #allocation3 [shape = 'u8[512]{0}', space=smem, size = 0x200, scoped, tag = 'prefetched SMEM operand 0']
  #allocation4 [shape = 'u8[512]{0}', space=smem, size = 0x200, scoped, tag = 'prefetched SMEM operand 1']
  %s0 = inlined_call_operand.hbm [shape: s32[2], index: 0, kind: input, shape index: {}]
  %s1 = inlined_call_operand.vmem [shape: s32[2], index: 1, kind: input, shape index: {}]
  %s2 = inlined_call_operand.hbm [shape: s32[8,128], index: 2, kind: input, shape index: {}]
  %s3 = inlined_call_operand.hbm [shape: f32[2,8,128], index: 3, kind: input, shape index: {}]
  %s4 = inlined_call_operand.hbm [shape: f32[2,8,128], index: 4, kind: output, shape index: {}]
  %s5 = sld [smem:[#allocation0]]
  $region57: #{tpu_custom_call.1} parent=0
    _
  %s7 = ssub.s32 1, %s5
  %s8 = scalar_select 0, %s7, %s5
  %10 = dma.hbm_to_smem %s0, 16, [#allocation3], [#allocation2]
  %s11 = sshll.u32 %s1, 4
  %s12 = int_to_ptr.vmem [resolvable:$true] %s11
  %14 = dma.vmem_to_smem %s12, 16, [#allocation4], [#allocation2]
  %15 = dma.done [#allocation2], 32
  %16 = sfence
  $region1: #{tpu_custom_call.1} parent=0
    #allocation5 [shape = 'u8[4096]{0}', space=vmem, size = 0x1000, scoped, tag = 'input window, operand 2, single buffered']
    #allocation6 [shape = 's32[2]{0}', space=sflag, size = 0x8, scoped, tag = 'scoped memory for tpu_custom_call.1']
    #allocation7 [shape = 's32[2]{0}', space=sflag, size = 0x8, scoped, tag = 'scoped memory for tpu_custom_call.1']
    #allocation8 [shape = 'u8[8192]{0}', space=vmem, size = 0x2000, scoped, tag = 'input window, operand 3']
    #allocation9 [shape = 's32[2]{0}', space=sflag, size = 0x8, scoped, tag = 'scoped memory for tpu_custom_call.1']
    #allocation10 [shape = 'u8[8192]{0}', space=vmem, size = 0x2000, scoped, tag = 'output window, operand 0']
    %17 = vsyncpa [#allocation6], 0
    %18 = vsyncpa [#allocation9], 0
    %s19 = scalar_lea.sflag [#allocation9], 1
    %20 = vsyncpa %s19, 0
    %21 = vsyncpa [#allocation7], 0
    %s22 = scalar_lea.sflag [#allocation7], 1
    %23 = vsyncpa %s22, 0
    loop: start=0, step=1, limit=4
    $region2: #{tpu_custom_call.1} parent=1 // loop_pre_header
      _
    $region3: #{tpu_custom_call.1} parent=1 // loop_header
      %s25 = sphi 0, %s29
      %p26 = scmp.ge.s32.totalorder %s25, 4
      %s32 = sphi 0, %s44
      %s33 = sphi 0, %s40
      %s34 = sphi 0, %s32
      %s35 = sphi 0, %s33
      %s36 = sphi 0, %s34
      %s37 = sphi 0, %s35
      %s45 = sphi 0, %s45
      %s47 = sphi 0, %s45
      %s48 = sphi 0, %s47
      %s62 = sphi 0, %s48
      %s70 = sphi 0, %s72
      %s73 = sphi 0, %s70
      %s74 = sphi 0, %s73
      %s90 = sphi 0, %s74
      %s98 = sphi 0, %s100
      %s101 = sphi 0, %s98
      %s102 = sphi 0, %s101
      %s118 = sphi 0, %s102
    $region4: #{tpu_custom_call.1} parent=1 // loop_header_branch
      %28 = sbr.rel (%p26) target = $region8
    $region5: #{tpu_custom_call.1} parent=1 // loop_body
      %s30 = ssub.s32 %s25, 1
      %s31 = ssub.s32 %s25, 2
      %s38 = sadd.s32 1, %s33
      %p39 = scmp.ge.s32.totalorder %s38, 1
      %s40 = scalar_select %p39, 0, %s38
      %s41 = sadd.s32 1, %s32
      %s42 = scalar_select %p39, %s41, %s32
      %p43 = scmp.ge.s32.totalorder %s42, 2
      %s44 = scalar_select %p43, 0, %s42
      %s46 = sadd.s32 %s45, 1
      %p49 = scmp.eq.s32.totalorder %s25, 1
      %p50 = scmp.ne.s32.totalorder %s45, %s47
      %p51 = scmp.eq.s32.totalorder %s25, 0
      %p52 = por %p50, %p51
      %p53 = scmp.ne.s32.totalorder %s45, %s47
      %p54 = scmp.eq.s32.totalorder %s30, 1
      %p55 = por %p53, %p54
      %p56 = scmp.ne.s32.totalorder %s47, %s48
      %p57 = scmp.eq.s32.totalorder %s30, 0
      %p58 = por %p56, %p57
      %p59 = scmp.ne.s32.totalorder %s47, %s48
      %p60 = scmp.eq.s32.totalorder %s31, 1
      %p61 = por %p59, %p60
      %p63 = scmp.ne.s32.totalorder %s48, %s62
      %p64 = scmp.eq.s32.totalorder %s31, 0
      %p65 = por %p63, %p64
      %s66 = ssub.s32 %s32, %s44
      %s67 = ssub.s32 %s33, %s40
      %s68 = sor.u32 %s66, %s67
      %p69 = scmp.eq.s32.totalorder %s68, 0
      %s71 = sadd.s32 %s70, 1
      %s72 = scalar_select %p69, %s70, %s71
      %p75 = pneg %p69
      %p76 = scmp.eq.s32.totalorder %s25, 1
      %p77 = por %p75, %p76
      %p78 = scmp.ne.s32.totalorder %s70, %s73
      %p79 = scmp.eq.s32.totalorder %s25, 0
      %p80 = por %p78, %p79
      %p81 = scmp.ne.s32.totalorder %s70, %s73
      %p82 = scmp.eq.s32.totalorder %s30, 1
      %p83 = por %p81, %p82
      %p84 = scmp.ne.s32.totalorder %s73, %s74
      %p85 = scmp.eq.s32.totalorder %s30, 0
      %p86 = por %p84, %p85
      %p87 = scmp.ne.s32.totalorder %s73, %s74
      %p88 = scmp.eq.s32.totalorder %s31, 1
      %p89 = por %p87, %p88
      %p91 = scmp.ne.s32.totalorder %s74, %s90
      %p92 = scmp.eq.s32.totalorder %s31, 0
      %p93 = por %p91, %p92
      %s94 = ssub.s32 %s32, %s44
      %s95 = ssub.s32 %s33, %s40
      %s96 = sor.u32 %s94, %s95
      %p97 = scmp.eq.s32.totalorder %s96, 0
      %s99 = sadd.s32 %s98, 1
      %s100 = scalar_select %p97, %s98, %s99
      %p103 = pneg %p97
      %p104 = scmp.eq.s32.totalorder %s25, 1
      %p105 = por %p103, %p104
      %p106 = scmp.ne.s32.totalorder %s98, %s101
      %p107 = scmp.eq.s32.totalorder %s25, 0
      %p108 = por %p106, %p107
      %p109 = scmp.ne.s32.totalorder %s98, %s101
      %p110 = scmp.eq.s32.totalorder %s30, 1
      %p111 = por %p109, %p110
      %p112 = scmp.ne.s32.totalorder %s101, %s102
      %p113 = scmp.eq.s32.totalorder %s30, 0
      %p114 = por %p112, %p113
      %p115 = scmp.ne.s32.totalorder %s101, %s102
      %p116 = scmp.eq.s32.totalorder %s31, 1
      %p117 = por %p115, %p116
      %p119 = scmp.ne.s32.totalorder %s102, %s118
      %p120 = scmp.eq.s32.totalorder %s31, 0
      %p121 = por %p119, %p120
      %p122 = scmp.le.s32.totalorder 1, %s25
      %p123 = scmp.lt.s32.totalorder %s25, 3
      %p124 = pnand %p122, %p123
      %p125 = pneg %p124
      // Predicated region
      $region9: #{tpu_custom_call.1} parent=5 // pred_check
        _
      $region10: #{tpu_custom_call.1} parent=5 // pred_check_branch
        %127 = sbr.rel (%p124) target = $region12
      $region11: #{tpu_custom_call.1} parent=5 // pred_region
        %s128 = ssub.s32 %s25, 1
        // Predicated region
        $region13: #{tpu_custom_call.1} parent=11 // pred_check
          %p129 = pneg %p58
        $region14: #{tpu_custom_call.1} parent=11 // pred_check_branch
          %131 = sbr.rel (%p129) target = $region16
        $region15: #{tpu_custom_call.1} parent=11 // pred_region
          %s133 = ssub.s32 128, 128
          %134 = vsyncadd [#allocation6], %s133
          %s136 = sshll.u32 [#allocation5], 4
          %s137 = int_to_ptr.vmem [resolvable:$true] %s136
          %139 = dma.hbm_to_vmem [thread:$0]  %s2, 128, %s137, [#allocation6]
        $region16: #{tpu_custom_call.1} parent=11 // pred_fallthru
          _
      $region12: #{tpu_custom_call.1} parent=5 // pred_fallthru
        _
      %p140 = scmp.lt.s32.totalorder %s25, 2
      // Predicated region
      $region17: #{tpu_custom_call.1} parent=5 // pred_check
        %p141 = pneg %p140
      $region18: #{tpu_custom_call.1} parent=5 // pred_check_branch
        %143 = sbr.rel (%p141) target = $region20
      $region19: #{tpu_custom_call.1} parent=5 // pred_region
        // Predicated region
        $region21: #{tpu_custom_call.1} parent=19 // pred_check
          %p144 = pneg %p80
        $region22: #{tpu_custom_call.1} parent=19 // pred_check_branch
          %146 = sbr.rel (%p144) target = $region24
        $region23: #{tpu_custom_call.1} parent=19 // pred_region
          %s147 = sand.u32 %s70, 1
          %s148 = scalar_lea.sflag [#allocation9], %s147
          %s149 = sand.u32 %s70, 1
          %s150 = smul.addr %s149, 8
          %s151 = scalar_lea.vmem [#allocation8], %s150
          %s153 = ssub.s32 128, 128
          %154 = vsyncadd %s148, %s153
          %s155 = sadd.s32 %s33, %s32
          %s156 = smul.addr %s155, 128
          %s157 = scalar_lea.hbm %s3, %s156
          %s159 = sshll.u32 %s151, 4
          %s160 = int_to_ptr.vmem [resolvable:$true] %s159
          %162 = dma.hbm_to_vmem [thread:$0]  %s157, 128, %s160, %s148
        $region24: #{tpu_custom_call.1} parent=19 // pred_fallthru
          _
      $region20: #{tpu_custom_call.1} parent=5 // pred_fallthru
        _
      %p163 = scmp.le.s32.totalorder 1, %s25
      %p164 = scmp.lt.s32.totalorder %s25, 3
      %p165 = pnand %p163, %p164
      %p166 = pneg %p165
      // Predicated region
      $region25: #{tpu_custom_call.1} parent=5 // pred_check
        _
      $region26: #{tpu_custom_call.1} parent=5 // pred_check_branch
        %168 = sbr.rel (%p165) target = $region28
      $region27: #{tpu_custom_call.1} parent=5 // pred_region
        %s169 = ssub.s32 %s25, 1
        // Predicated region
        $region29: #{tpu_custom_call.1} parent=27 // pred_check
          %p170 = pneg %p58
        $region30: #{tpu_custom_call.1} parent=27 // pred_check_branch
          %172 = sbr.rel (%p170) target = $region32
        $region31: #{tpu_custom_call.1} parent=27 // pred_region
          %173 = dma.done [#allocation6], 128
        $region32: #{tpu_custom_call.1} parent=27 // pred_fallthru
          _
        %s174 = sand.u32 %s73, 1
        %s175 = scalar_lea.sflag [#allocation9], %s174
        %s176 = sand.u32 %s73, 1
        %s177 = smul.addr %s176, 8
        %s178 = scalar_lea.vmem [#allocation8], %s177
        // Predicated region
        $region33: #{tpu_custom_call.1} parent=27 // pred_check
          %p179 = pneg %p86
        $region34: #{tpu_custom_call.1} parent=27 // pred_check_branch
          %181 = sbr.rel (%p179) target = $region36
        $region35: #{tpu_custom_call.1} parent=27 // pred_region
          %182 = dma.done %s175, 128
        $region36: #{tpu_custom_call.1} parent=27 // pred_fallthru
          _
        %p183 = pneg %p58
        %p184 = pneg %p55
        %s185 = sand.u32 %s73, 1
        %s186 = scalar_lea.sflag [#allocation9], %s185
        %s187 = sand.u32 %s73, 1
        %s188 = smul.addr %s187, 8
        %s189 = scalar_lea.vmem [#allocation8], %s188
        %p190 = pneg %p86
        %p191 = pneg %p83
        %p192 = pneg %p114
        %p193 = pneg %p111
        %s194 = sand.u32 %s101, 1
        %s195 = scalar_lea.sflag [#allocation7], %s194
        %s196 = sand.u32 %s101, 1
        %s197 = smul.addr %s196, 8
        %s198 = scalar_lea.vmem [#allocation10], %s197
        %s199 = sld [smem:[#allocation4 + %s34]]
        %p200 = scmp.ne.s32.totalorder %s199, 0
        // Predicated region
        $region37: #{tpu_custom_call.1} parent=27 // pred_check
          %p201 = pneg %p200
        $region38: #{tpu_custom_call.1} parent=27 // pred_check_branch
          %203 = sbr.rel (%p201) target = $region40
        $region39: #{tpu_custom_call.1} parent=27 // pred_region
          %v204 = vld [vmem:[%s178] sm:$0xff]
          %s205 = sld [smem:[#allocation3 + %s34]]
          %s206 = smul.u32 %s205, 2654435769
          %s207 = smul.u32 %s35, 1024
          %s208 = sadd.s32 %s206, %s207
          %v209 = vld [vmem:[#allocation5] sm:$0xff]
          %v210 = vstv %s208
          %v211 = vadd.s32 %v209, %v210
          %v212 = vshrl.u32 %v211, 16
          %v213 = vxor.u32 %v211, %v212
          %v214 = vmul.u32 %v213, 2146121005
          %v215 = vshrl.u32 %v214, 15
          %v216 = vxor.u32 %v214, %v215
          %v217 = vmul.u32 %v216, 2221713035
          %v218 = vshrl.u32 %v217, 16
          %v219 = vxor.u32 %v217, %v218
          %v220 = vand.u32 %v219, 255
          %v221 = vshrl.u32 %v219, 8
          %v222 = vand.u32 %v221, 255
          %v223 = vadd.s32 %v220, %v222
          %v224 = vshrl.u32 %v219, 16
          %v225 = vand.u32 %v224, 255
          %v226 = vadd.s32 %v223, %v225
          %v227 = vshrl.u32 %v219, 24
          %v228 = vadd.s32 %v226, %v227
          %v229 = vcvt.s32.f32 %v228
          %v230 = vmul.f32 %v229, 0.00031523744
          %v231 = vadd.f32 %v230, -0.16077109
          %v232 = vmul.u32 %v219, 2654435769
          %v233 = vshrl.u32 %v232, 9
          %v234 = vor.u32 %v233, 1065353216
          %v236 = vmul.f32 %v234, 0.091422215
          %v237 = vadd.f32 %v236, 0.8628667
          %v238 = vmul.f32 %v204, %v237
          %v239 = vadd.f32 %v238, %v231
          %240 = vst [vmem:[%s198] sm:$0xff] %v239
        $region40: #{tpu_custom_call.1} parent=27 // pred_fallthru
          _
        %s241 = sld [smem:[#allocation4 + %s34]]
        %p242 = scmp.eq.s32.totalorder %s241, 0
        // Predicated region
        $region41: #{tpu_custom_call.1} parent=27 // pred_check
          %p243 = pneg %p242
        $region42: #{tpu_custom_call.1} parent=27 // pred_check_branch
          %245 = sbr.rel (%p243) target = $region44
        $region43: #{tpu_custom_call.1} parent=27 // pred_region
          %v246 = vld [vmem:[%s178] sm:$0xff]
          %247 = vst [vmem:[%s198] sm:$0xff] %v246
        $region44: #{tpu_custom_call.1} parent=27 // pred_fallthru
          _
        %s248 = sand.u32 %s101, 1
        %s249 = scalar_lea.sflag [#allocation7], %s248
        %s250 = sand.u32 %s101, 1
        %s251 = smul.addr %s250, 8
        %s252 = scalar_lea.vmem [#allocation10], %s251
        // Predicated region
        $region45: #{tpu_custom_call.1} parent=27 // pred_check
          %p253 = pneg %p111
        $region46: #{tpu_custom_call.1} parent=27 // pred_check_branch
          %255 = sbr.rel (%p253) target = $region48
        $region47: #{tpu_custom_call.1} parent=27 // pred_region
          %s257 = ssub.s32 128, 128
          %258 = vsyncadd %s249, %s257
          %s259 = sadd.s32 %s35, %s34
          %s260 = smul.addr %s259, 128
          %s261 = scalar_lea.hbm %s4, %s260
          %s263 = sshll.u32 %s252, 4
          %s264 = int_to_ptr.vmem [resolvable:$true] %s263
          %266 = dma.vmem_to_hbm [thread:$0]  %s264, 128, %s261, %s249
        $region48: #{tpu_custom_call.1} parent=27 // pred_fallthru
          _
      $region28: #{tpu_custom_call.1} parent=5 // pred_fallthru
        _
      %p267 = scmp.le.s32.totalorder 2, %s25
      // Predicated region
      $region49: #{tpu_custom_call.1} parent=5 // pred_check
        %p268 = pneg %p267
      $region50: #{tpu_custom_call.1} parent=5 // pred_check_branch
        %270 = sbr.rel (%p268) target = $region52
      $region51: #{tpu_custom_call.1} parent=5 // pred_region
        %s271 = ssub.s32 %s25, 2
        // Predicated region
        $region53: #{tpu_custom_call.1} parent=51 // pred_check
          %p272 = pneg %p117
        $region54: #{tpu_custom_call.1} parent=51 // pred_check_branch
          %274 = sbr.rel (%p272) target = $region56
        $region55: #{tpu_custom_call.1} parent=51 // pred_region
          %s275 = sand.u32 %s102, 1
          %s276 = scalar_lea.sflag [#allocation7], %s275
          %s277 = sand.u32 %s102, 1
          %s278 = smul.addr %s277, 8
          %s279 = scalar_lea.vmem [#allocation10], %s278
          %280 = dma.done %s276, 128
        $region56: #{tpu_custom_call.1} parent=51 // pred_fallthru
          _
      $region52: #{tpu_custom_call.1} parent=5 // pred_fallthru
        _
    $region6: #{tpu_custom_call.1} parent=1 // loop_footer
      %s29 = sadd.s32 1, %s25
    $region7: #{tpu_custom_call.1} parent=1 // loop_footer_branch
      %24 = sbr.rel target = $region3
    $region8: #{tpu_custom_call.1} parent=1 // loop_exit
      _
    %281 = vsyncpa [#allocation6], 1
    %s282 = scalar_lea.sflag [#allocation6], 1
    %283 = vsyncpa %s282, 1
    %284 = vsyncpa [#allocation9], 1
    %s285 = scalar_lea.sflag [#allocation9], 1
    %286 = vsyncpa %s285, 1
    %287 = vsyncpa [#allocation7], 1
    %s288 = scalar_lea.sflag [#allocation7], 1
    %289 = vsyncpa %s288, 1

</llo_original>
